<compile_context>
chip_gen: v7x
topology: tpu7x:2x2x1
jax: 0.10.0
libtpu: 0.0.40
codegen_flags: <defaults>
</compile_context>

<pallas_src>
import functools

import jax
import jax.numpy as jnp
from jax import lax
from jax.experimental import pallas as pl
from jax.experimental.pallas import tpu as pltpu


def _conv_bn_lrelu_kernel(x_ref, wb_ref, gb_ref, unfold_ref, o_ref, *,
                          skip_bn, activation, eps, neg_slope):
    # x_ref:      (N*H, 3*W*Cin)    bf16 -- H-im2col'd, (kh, w, cin) fused on K
    # wb_ref:     (3*W*Cin, W*Cout) bf16 -- banded weight (kw taps + W pad inside)
    # gb_ref:     (2, Cout)         f32  -- row 0 = gamma, row 1 = beta
    # unfold_ref: (Cout, W*Cout)    f32  -- per-channel <-> fused (w, cout) lanes
    # o_ref:      (N*H, W*Cout)     f32  -- lane-dense output slab
    R = x_ref.shape[0]
    WCout = wb_ref.shape[-1]
    Cout = unfold_ref.shape[0]
    W = WCout // Cout

    # Single lane-dense MXU matmul (bf16 operands, f32 accumulation). All nine
    # conv taps live in K = 3*W*Cin, so there are no shifted slices, no
    # relayouts and only one MXU push/drain inside the kernel.
    y = jnp.dot(x_ref[...], wb_ref[...], preferred_element_type=jnp.float32)

    if not skip_bn:
        # Training-mode batch statistics, one pass: per-column sum / sum-of-
        # squares (sublane reduction), then ONE batched fold matmul to get
        # per-channel totals and ONE batched unfold matmul to broadcast the
        # per-channel (scale, bias) back onto the fused (w, cout) lane axis.
        inv_cnt = 1.0 / float(R * W)
        s1 = jnp.sum(y, axis=0, keepdims=True)            # (1, W*Cout)
        s2 = jnp.sum(y * y, axis=0, keepdims=True)        # (1, W*Cout)
        s12 = jnp.concatenate([s1, s2], axis=0)           # (2, W*Cout)
        s12c = lax.dot_general(                           # == s12 @ unfold.T
            s12, unfold_ref[...], (((1,), (1,)), ((), ())),
            preferred_element_type=jnp.float32)           # (2, Cout)
        mean = s12c[0:1, :] * inv_cnt
        var = jnp.maximum(s12c[1:2, :] * inv_cnt - mean * mean, 0.0)  # biased
        scale = gb_ref[0:1, :] * lax.rsqrt(var + eps)     # (1, Cout)
        bias = gb_ref[1:2, :] - mean * scale              # (1, Cout)
        sb = jnp.concatenate([scale, bias], axis=0)       # (2, Cout)
        sb_row = jnp.dot(sb, unfold_ref[...],
                         preferred_element_type=jnp.float32)  # (2, W*Cout)
        y = y * sb_row[0:1, :] + sb_row[1:2, :]           # folded affine

    if activation == 'leaky_relu':
        y = jnp.where(y >= 0, y, neg_slope * y)
    # activation == 'none': pass through

    o_ref[...] = y.astype(o_ref.dtype)                    # unmasked lane-dense vst


def prepare_conv_bn_params(w_oihw, gamma, beta, W):
    """Precompute layout-only constants ONCE (module init, not per forward).

    Returns (wb, gb, unfold):
      wb:     (3*W*Cin, W*Cout) bf16 banded conv weight (kw taps + W padding
              folded in; kh taps concatenated along K).
      gb:     (2, Cout) f32, rows = (gamma, beta).
      unfold: (Cout, W*Cout) f32 per-channel <-> fused-lane map (lane-dense).
    """
    Cout, Cin, KH, KW = w_oihw.shape
    assert (KH, KW) == (3, 3), "kernel specialised for ks=3, stride=1, pad=1"

    # wb[(kh, w_in, ci), (w_out, co)] = W[kh, w_in - w_out + 1, ci, co]
    # for w_in - w_out in {-1, 0, 1}, else 0 (this realises padding=1 along W).
    w_hwio = jnp.transpose(w_oihw, (2, 3, 1, 0)).astype(jnp.float32)  # (3,3,Cin,Cout)
    wi = jnp.arange(W)
    wo = jnp.arange(W)
    kw = wi[:, None] - wo[None, :] + 1                                 # (W, W)
    valid = ((kw >= 0) & (kw <= 2)).astype(jnp.float32)
    band = w_hwio[:, jnp.clip(kw, 0, 2), :, :]                         # (3,W,W,Cin,Cout)
    band = band * valid[None, :, :, None, None]
    wb = jnp.transpose(band, (0, 1, 3, 2, 4)).reshape(3 * W * Cin, W * Cout)
    wb = wb.astype(jnp.bfloat16)

    gb = jnp.stack([gamma.astype(jnp.float32).reshape(Cout),
                    beta.astype(jnp.float32).reshape(Cout)], axis=0)   # (2, Cout)

    # unfold[c, w*Cout + c] = 1  (long 128-multiple axis last -> no lane padding)
    unfold = jnp.tile(jnp.eye(Cout, dtype=jnp.float32), (1, W))        # (Cout, W*Cout)
    return wb, gb, unfold


def conv_bn_relu(x_nchw, params, *, activation='leaky_relu', skip_bn=False,
                 eps=1e-5, neg_slope=0.01):
    """Fused Conv(3x3, s=1, p=1, no bias) + BN(train) + LeakyReLU. NCHW in/out."""
    wb, gb, unfold = params
    N, Cin, H, W = x_nchw.shape
    Cout = gb.shape[-1]
    assert wb.shape == (3 * W * Cin, W * Cout)

    # NCHW -> NHWC in bf16 (MXU operand dtype); pad only H by 1 (the W halo is
    # folded into the banded weight); im2col over H only so the kernel does a
    # single aligned (N*H, 3*W*Cin) @ (3*W*Cin, W*Cout) matmul.
    x = jnp.transpose(x_nchw.astype(jnp.bfloat16), (0, 2, 3, 1))  # (N, H, W, Cin)
    xpad = jnp.pad(x, ((0, 0), (1, 1), (0, 0), (0, 0)))           # (N, H+2, W, Cin)
    xflat = xpad.reshape(N, H + 2, W * Cin)
    xim = jnp.stack([xflat[:, kh:kh + H, :] for kh in range(3)], axis=2)
    xim = xim.reshape(N * H, 3 * W * Cin)

    kernel = functools.partial(
        _conv_bn_lrelu_kernel,
        skip_bn=skip_bn, activation=activation,
        eps=float(eps), neg_slope=float(neg_slope))

    # Small feature map: gridless single block (~80 KB of VMEM total), so the
    # default scoped VMEM limit is ample on v5e/v6e/v7x.
    y2d = pl.pallas_call(
        kernel,
        out_shape=jax.ShapeDtypeStruct((N * H, W * Cout), jnp.float32),
        in_specs=[pl.BlockSpec(memory_space=pltpu.MemorySpace.VMEM)] * 4,
        out_specs=pl.BlockSpec(memory_space=pltpu.MemorySpace.VMEM),
    )(xim, wb, gb, unfold)

    # (N*H, W*Cout) -> NCHW (kept for module parity; drop if the consumer can
    # take the NHWC / lane-dense slab directly).
    return jnp.transpose(y2d.reshape(N, H, W, Cout), (0, 3, 1, 2))


def _reference(x_nchw, w_oihw, gamma, beta, eps=1e-5, neg_slope=0.01):
    """Plain-JAX reference: conv + train-mode BN + leaky relu.

    Conv operands are cast to bf16 (f32 accumulation) to match the kernel's
    MXU precision, so the comparison tolerance can stay tight (1e-4). Note the
    fused kernel therefore matches a true f32 PyTorch module only to ~bf16
    operand precision.
    """
    y = jax.lax.conv_general_dilated(
        x_nchw.astype(jnp.bfloat16), w_oihw.astype(jnp.bfloat16),
        window_strides=(1, 1), padding=((1, 1), (1, 1)),
        dimension_numbers=('NCHW', 'OIHW', 'NCHW'),
        preferred_element_type=jnp.float32)
    mean = jnp.mean(y, axis=(0, 2, 3), keepdims=True)
    var = jnp.mean((y - mean) ** 2, axis=(0, 2, 3), keepdims=True)  # biased
    y = (y - mean) * jax.lax.rsqrt(var + eps)
    y = y * gamma.reshape(1, -1, 1, 1) + beta.reshape(1, -1, 1, 1)
    return jnp.where(y >= 0, y, neg_slope * y)


if __name__ == "__main__":
    # ConvBNReLU(in_chan=4, out_chan=8, ks=3, stride=1, padding=1)
    N, Cin, H, W = 2, 4, 16, 16
    Cout, KS = 8, 3

    key = jax.random.PRNGKey(0)
    kx, kw_key = jax.random.split(key)

    x = jax.random.normal(kx, (N, Cin, H, W), dtype=jnp.float32)

    # kaiming_normal_(a=1), fan_in mode: std = sqrt(2/(1+a^2))/sqrt(fan_in)
    fan_in = Cin * KS * KS
    w_conv = jax.random.normal(kw_key, (Cout, Cin, KS, KS),
                               dtype=jnp.float32) / jnp.sqrt(fan_in)

    # BatchNorm2d default init: weight=1, bias=0 (running stats unused in
    # training-mode forward)
    gamma = jnp.ones((Cout,), jnp.float32)
    beta = jnp.zeros((Cout,), jnp.float32)

    # Layout-only constants built ONCE (module init), reused every forward.
    params = prepare_conv_bn_params(w_conv, gamma, beta, W)

    out = conv_bn_relu(x, params)
    out = jax.block_until_ready(out)

    ref = _reference(x, w_conv, gamma, beta)
    assert out.shape == (N, Cout, H, W)
    err = float(jnp.max(jnp.abs(out - ref)))
    assert err < 1e-4, f"mismatch vs reference: max abs err = {err}"

    print("KERNEL_OK")
</pallas_src>

<mosaic_0001>
module attributes {stable_mosaic.version = 11 : i64} {
  func.func @_conv_bn_lrelu_kernel(%arg0: memref<32x192xbf16, #tpu.memory_space<vmem>>, %arg1: memref<192x128xbf16, #tpu.memory_space<vmem>>, %arg2: memref<2x8xf32, #tpu.memory_space<vmem>>, %arg3: memref<8x128xf32, #tpu.memory_space<vmem>>, %arg4: memref<32x128xf32, #tpu.memory_space<vmem>>) attributes {dimension_semantics = [], scalar_prefetch = 0 : i64, scratch_operands = 0 : i64, tpu.core_type = #tpu.core_type<tc>} {
    %c0 = arith.constant 0 : index
    %c0_0 = arith.constant 0 : index
    %0 = vector.load %arg0[%c0, %c0_0] : memref<32x192xbf16, #tpu.memory_space<vmem>>, vector<32x192xbf16>
    %c0_1 = arith.constant 0 : index
    %c0_2 = arith.constant 0 : index
    %1 = vector.load %arg1[%c0_1, %c0_2] : memref<192x128xbf16, #tpu.memory_space<vmem>>, vector<192x128xbf16>
    %cst = arith.constant dense<0.000000e+00> : vector<32x128xf32>
    %2 = tpu.matmul %0, %1, %cst {dimension_numbers = #tpu.dot_dimension_numbers<[1], [0], [0], [1], [0, 0, 1, 1], [], []>} : vector<32x192xbf16>, vector<192x128xbf16>, vector<32x128xf32> -> vector<32x128xf32>
    %cst_3 = arith.constant dense<0.000000e+00> : vector<128xf32>
    %3 = vector.multi_reduction <add>, %2, %cst_3 [0] : vector<32x128xf32> to vector<128xf32>
    %4 = vector.shape_cast %3 : vector<128xf32> to vector<1x128xf32>
    %5 = arith.mulf %2, %2 : vector<32x128xf32>
    %cst_4 = arith.constant dense<0.000000e+00> : vector<128xf32>
    %6 = vector.multi_reduction <add>, %5, %cst_4 [0] : vector<32x128xf32> to vector<128xf32>
    %7 = vector.shape_cast %6 : vector<128xf32> to vector<1x128xf32>
    %8 = tpu.concatenate %4, %7 in 0 : vector<1x128xf32>, vector<1x128xf32> -> vector<2x128xf32>
    %c0_5 = arith.constant 0 : index
    %c0_6 = arith.constant 0 : index
    %9 = vector.load %arg3[%c0_5, %c0_6] : memref<8x128xf32, #tpu.memory_space<vmem>>, vector<8x128xf32>
    %cst_7 = arith.constant dense<0.000000e+00> : vector<2x8xf32>
    %10 = tpu.matmul %8, %9, %cst_7 {dimension_numbers = #tpu.dot_dimension_numbers<[1], [1], [0], [0], [0, 0, 1, 0], [], []>} : vector<2x128xf32>, vector<8x128xf32>, vector<2x8xf32> -> vector<2x8xf32>
    %11 = vector.extract_strided_slice %10 {offsets = [0, 0], sizes = [1, 8], strides = [1, 1]} : vector<2x8xf32> to vector<1x8xf32>
    %cst_8 = arith.constant 0.001953125 : f32
    %12 = vector.broadcast %cst_8 : f32 to vector<1x8xf32>
    %13 = arith.mulf %11, %12 : vector<1x8xf32>
    %14 = vector.extract_strided_slice %10 {offsets = [1, 0], sizes = [1, 8], strides = [1, 1]} : vector<2x8xf32> to vector<1x8xf32>
    %cst_9 = arith.constant 0.001953125 : f32
    %15 = vector.broadcast %cst_9 : f32 to vector<1x8xf32>
    %16 = arith.mulf %14, %15 : vector<1x8xf32>
    %17 = arith.mulf %13, %13 : vector<1x8xf32>
    %18 = arith.subf %16, %17 : vector<1x8xf32>
    %cst_10 = arith.constant 0.000000e+00 : f32
    %19 = vector.broadcast %cst_10 : f32 to vector<1x8xf32>
    %20 = arith.maximumf %18, %19 : vector<1x8xf32>
    %c0_11 = arith.constant 0 : index
    %c0_12 = arith.constant 0 : index
    %21 = vector.load %arg2[%c0_11, %c0_12] : memref<2x8xf32, #tpu.memory_space<vmem>>, vector<1x8xf32>
    %cst_13 = arith.constant 9.99999974E-6 : f32
    %22 = vector.broadcast %cst_13 : f32 to vector<1x8xf32>
    %23 = arith.addf %20, %22 : vector<1x8xf32>
    %24 = math.rsqrt %23 : vector<1x8xf32>
    %25 = arith.mulf %21, %24 : vector<1x8xf32>
    %c1 = arith.constant 1 : index
    %c0_14 = arith.constant 0 : index
    %26 = vector.load %arg2[%c1, %c0_14] : memref<2x8xf32, #tpu.memory_space<vmem>>, vector<1x8xf32>
    %27 = arith.mulf %13, %25 : vector<1x8xf32>
    %28 = arith.subf %26, %27 : vector<1x8xf32>
    %29 = tpu.concatenate %25, %28 in 0 : vector<1x8xf32>, vector<1x8xf32> -> vector<2x8xf32>
    %c0_15 = arith.constant 0 : index
    %c0_16 = arith.constant 0 : index
    %30 = vector.load %arg3[%c0_15, %c0_16] : memref<8x128xf32, #tpu.memory_space<vmem>>, vector<8x128xf32>
    %cst_17 = arith.constant dense<0.000000e+00> : vector<2x128xf32>
    %31 = tpu.matmul %29, %30, %cst_17 {dimension_numbers = #tpu.dot_dimension_numbers<[1], [0], [0], [1], [0, 0, 1, 1], [], []>} : vector<2x8xf32>, vector<8x128xf32>, vector<2x128xf32> -> vector<2x128xf32>
    %32 = vector.extract_strided_slice %31 {offsets = [0, 0], sizes = [1, 128], strides = [1, 1]} : vector<2x128xf32> to vector<1x128xf32>
    %33 = vector.broadcast %32 : vector<1x128xf32> to vector<32x128xf32>
    %34 = arith.mulf %2, %33 : vector<32x128xf32>
    %35 = vector.extract_strided_slice %31 {offsets = [1, 0], sizes = [1, 128], strides = [1, 1]} : vector<2x128xf32> to vector<1x128xf32>
    %36 = vector.broadcast %35 : vector<1x128xf32> to vector<32x128xf32>
    %37 = arith.addf %34, %36 : vector<32x128xf32>
    %cst_18 = arith.constant 0.000000e+00 : f32
    %38 = vector.broadcast %cst_18 : f32 to vector<32x128xf32>
    %39 = arith.cmpf oge, %37, %38 : vector<32x128xf32>
    %cst_19 = arith.constant 0.00999999977 : f32
    %40 = vector.broadcast %cst_19 : f32 to vector<32x128xf32>
    %41 = arith.mulf %40, %37 : vector<32x128xf32>
    %42 = arith.select %39, %37, %41 : vector<32x128xi1>, vector<32x128xf32>
    %c0_20 = arith.constant 0 : index
    %c0_21 = arith.constant 0 : index
    %43 = vector.load %arg4[%c0_20, %c0_21] : memref<32x128xf32, #tpu.memory_space<vmem>>, vector<32x128xf32>
    tpu.vector_store %arg4[%c0_20, %c0_21], %42 {strides = array<i32>} : memref<32x128xf32, #tpu.memory_space<vmem>>, vector<32x128xf32>,
    return
  }
}

</mosaic_0001>

<llo_original>
// kernel: tpu_custom_call.1
$region0: #{tpu_custom_call.1}
  #allocation0 [shape = 'u32[]', space=smem, size = 0x4, offset = 0x4, fixed_abs, tag = 'smem constant byte address 0x4 - core index']
  #allocation1 [shape = 'u32[144,128]{1,0:T(1,128)}', space=vmem, size = 0x12000, scoped, tag = 'internal scratch']
  %s0 = inlined_call_operand.hbm [shape: bf16[32,192], index: 0, kind: input, shape index: {}]
  %s1 = inlined_call_operand.hbm [shape: bf16[192,128], index: 1, kind: input, shape index: {}]
  %s2 = inlined_call_operand.vmem [shape: f32[2,8], index: 2, kind: input, shape index: {}]
  %s3 = inlined_call_operand.vmem [shape: f32[8,128], index: 3, kind: input, shape index: {}]
  %s4 = inlined_call_operand.hbm [shape: f32[32,128], index: 4, kind: output, shape index: {}]
  %s5 = sld [smem:[#allocation0]]
  $region34: #{tpu_custom_call.1} parent=0
    _
  %s7 = ssub.s32 1, %s5
  %s8 = scalar_select 0, %s7, %s5
  $region1: #{tpu_custom_call.1} parent=0
    #allocation2 [shape = 'u8[16384]{0}', space=vmem, size = 0x4000, scoped, tag = 'input window, operand 0, single buffered']
    #allocation3 [shape = 's32[1]{0}', space=sflag, size = 0x4, scoped, tag = 'scoped memory for tpu_custom_call.1']
    #allocation4 [shape = 's32[1]{0}', space=sflag, size = 0x4, scoped, tag = 'scoped memory for tpu_custom_call.1']
    #allocation5 [shape = 'u8[49152]{0}', space=vmem, size = 0xc000, scoped, tag = 'input window, operand 1, single buffered']
    #allocation6 [shape = 's32[1]{0}', space=sflag, size = 0x4, scoped, tag = 'scoped memory for tpu_custom_call.1']
    #allocation7 [shape = 'u8[16384]{0}', space=vmem, size = 0x4000, scoped, tag = 'output window, operand 0, single buffered']
    %9 = vsyncpa [#allocation3], 0
    %10 = vsyncpa [#allocation6], 0
    %11 = vsyncpa [#allocation4], 0
    // Predicated region
    $region2: #{tpu_custom_call.1} parent=1 // pred_check
      _
    $region3: #{tpu_custom_call.1} parent=1 // pred_check_branch
      %13 = sbr.rel (0) target = $region5
    $region4: #{tpu_custom_call.1} parent=1 // pred_region
      %s15 = ssub.s32 512, 512
      %16 = vsyncadd [#allocation3], %s15
      %s17 = sshll.u32 [#allocation2], 4
      %s18 = int_to_ptr.vmem [resolvable:$true] %s17
      %23 = dma.hbm_to_vmem [thread:$0]  %s0, 512, %s18, [#allocation3], 128, 128, 8
    $region5: #{tpu_custom_call.1} parent=1 // pred_fallthru
      _
    // Predicated region
    $region6: #{tpu_custom_call.1} parent=1 // pred_check
      _
    $region7: #{tpu_custom_call.1} parent=1 // pred_check_branch
      %25 = sbr.rel (0) target = $region9
    $region8: #{tpu_custom_call.1} parent=1 // pred_region
      %s27 = ssub.s32 1536, 1536
      %28 = vsyncadd [#allocation6], %s27
      %s29 = sshll.u32 [#allocation5], 4
      %s30 = int_to_ptr.vmem [resolvable:$true] %s29
      %35 = dma.hbm_to_vmem [thread:$0]  %s1, 1536, %s30, [#allocation6], 64, 64, 4
    $region9: #{tpu_custom_call.1} parent=1 // pred_fallthru
      _
    // Predicated region
    $region10: #{tpu_custom_call.1} parent=1 // pred_check
      _
    $region11: #{tpu_custom_call.1} parent=1 // pred_check_branch
      %37 = sbr.rel (0) target = $region13
    $region12: #{tpu_custom_call.1} parent=1 // pred_region
      _
    $region13: #{tpu_custom_call.1} parent=1 // pred_fallthru
      _
    // Predicated region
    $region14: #{tpu_custom_call.1} parent=1 // pred_check
      _
    $region15: #{tpu_custom_call.1} parent=1 // pred_check_branch
      %39 = sbr.rel (0) target = $region17
    $region16: #{tpu_custom_call.1} parent=1 // pred_region
      _
    $region17: #{tpu_custom_call.1} parent=1 // pred_fallthru
      _
    // Predicated region
    $region18: #{tpu_custom_call.1} parent=1 // pred_check
      _
    $region19: #{tpu_custom_call.1} parent=1 // pred_check_branch
      %41 = sbr.rel (0) target = $region21
    $region20: #{tpu_custom_call.1} parent=1 // pred_region
      %42 = dma.done [#allocation3], 512
    $region21: #{tpu_custom_call.1} parent=1 // pred_fallthru
      _
    // Predicated region
    $region22: #{tpu_custom_call.1} parent=1 // pred_check
      _
    $region23: #{tpu_custom_call.1} parent=1 // pred_check_branch
      %44 = sbr.rel (0) target = $region25
    $region24: #{tpu_custom_call.1} parent=1 // pred_region
      %45 = dma.done [#allocation6], 1536
    $region25: #{tpu_custom_call.1} parent=1 // pred_fallthru
      _
    %v47 = vld [vmem:[#allocation2] sm:$0xff]
    %v48 = vld [vmem:[#allocation2 + $0x8] sm:$0xff]
    %v49 = vld [vmem:[#allocation2 + $0x10] sm:$0xff]
    %v50 = vld [vmem:[#allocation2 + $0x18] sm:$0xff]
    %v51 = vld [vmem:[#allocation5] sm:$0xf]
    %v52 = vld [vmem:[#allocation5 + $0x4] sm:$0xf]
    %v53 = vld [vmem:[#allocation5 + $0x8] sm:$0xf]
    %v54 = vld [vmem:[#allocation5 + $0xc] sm:$0xf]
    %v55 = vld [vmem:[#allocation5 + $0x10] sm:$0xf]
    %v56 = vld [vmem:[#allocation5 + $0x14] sm:$0xf]
    %v57 = vld [vmem:[#allocation5 + $0x18] sm:$0xf]
    %v58 = vld [vmem:[#allocation5 + $0x1c] sm:$0xf]
    %v59 = vld [vmem:[#allocation5 + $0x20] sm:$0xf]
    %v60 = vld [vmem:[#allocation5 + $0x24] sm:$0xf]
    %v61 = vld [vmem:[#allocation5 + $0x28] sm:$0xf]
    %v62 = vld [vmem:[#allocation5 + $0x2c] sm:$0xf]
    %v63 = vld [vmem:[#allocation5 + $0x30] sm:$0xf]
    %v64 = vld [vmem:[#allocation5 + $0x34] sm:$0xf]
    %v65 = vld [vmem:[#allocation5 + $0x38] sm:$0xf]
    %v66 = vld [vmem:[#allocation5 + $0x3c] sm:$0xf]
    %v67 = vld [vmem:[#allocation5 + $0x40] sm:$0xf]
    %v68 = vld [vmem:[#allocation5 + $0x44] sm:$0xf]
    %v69 = vld [vmem:[#allocation5 + $0x48] sm:$0xf]
    %v70 = vld [vmem:[#allocation5 + $0x4c] sm:$0xf]
    %v71 = vld [vmem:[#allocation5 + $0x50] sm:$0xf]
    %v72 = vld [vmem:[#allocation5 + $0x54] sm:$0xf]
    %v73 = vld [vmem:[#allocation5 + $0x58] sm:$0xf]
    %v74 = vld [vmem:[#allocation5 + $0x5c] sm:$0xf]
    %v79 = vunpack.c.l.b16 %v47
    %v80 = vunpack.c.h.b16 %v47
    %v81 = vunpack.c.l.b16 %v48
    %v82 = vunpack.c.h.b16 %v48
    %v83 = vunpack.c.l.b16 %v49
    %v84 = vunpack.c.h.b16 %v49
    %v85 = vunpack.c.l.b16 %v50
    %v86 = vunpack.c.h.b16 %v50
    %v87 = vpack.c.b16 %v81, %v79
    %v88 = vpack.c.b16 %v82, %v80
    %v89 = vpack.c.b16 %v85, %v83
    %v90 = vpack.c.b16 %v86, %v84
    %v117 = vunpack.c.l.b16 %v51
    %v118 = vunpack.c.l.b16 %v52
    %v119 = vunpack.c.l.b16 %v53
    %v120 = vunpack.c.l.b16 %v54
    %v121 = vunpack.c.l.b16 %v55
    %v122 = vunpack.c.l.b16 %v56
    %v123 = vunpack.c.l.b16 %v57
    %v124 = vunpack.c.l.b16 %v58
    %v125 = vunpack.c.l.b16 %v59
    %v126 = vunpack.c.l.b16 %v60
    %v127 = vunpack.c.l.b16 %v61
    %v128 = vunpack.c.l.b16 %v62
    %v129 = vunpack.c.l.b16 %v63
    %v130 = vunpack.c.l.b16 %v64
    %v131 = vunpack.c.l.b16 %v65
    %v132 = vunpack.c.l.b16 %v66
    %v133 = vunpack.c.l.b16 %v67
    %v134 = vunpack.c.l.b16 %v68
    %v135 = vunpack.c.l.b16 %v69
    %v136 = vunpack.c.l.b16 %v70
    %v137 = vunpack.c.l.b16 %v71
    %v138 = vunpack.c.l.b16 %v72
    %v139 = vunpack.c.l.b16 %v73
    %v140 = vunpack.c.l.b16 %v74
    %v141 = vpack.c.b16 %v118, %v117
    %v142 = vpack.c.b16 %v120, %v119
    %v143 = vpack.c.b16 %v122, %v121
    %v144 = vpack.c.b16 %v124, %v123
    %v145 = vpack.c.b16 %v126, %v125
    %v146 = vpack.c.b16 %v128, %v127
    %v147 = vpack.c.b16 %v130, %v129
    %v148 = vpack.c.b16 %v132, %v131
    %v149 = vpack.c.b16 %v134, %v133
    %v150 = vpack.c.b16 %v136, %v135
    %v151 = vpack.c.b16 %v138, %v137
    %v152 = vpack.c.b16 %v140, %v139
    %vm165 = vcmask 523264
    %v167 = vsel %vm165, %v88, 0
    %v170 = vsel %vm165, %v90, 0
    %172 = vmatprep.subr.bf16.mxu0 0
    %173 = vmatpush1.bf16.msra.mxu0 %v141
    %174 = vmatprep.subr.bf16.mxu0 0
    %175 = vmatpush1.bf16.msra.mxu0 %v142
    %176 = vmatprep.subr.bf16.mxu0 0
    %177 = vmatpush1.bf16.msra.mxu0 %v143
    %178 = vmatprep.subr.bf16.mxu0 0
    %179 = vmatpush1.bf16.msra.mxu0 %v144
    %180 = vmatprep.subr.bf16.mxu0 0
    %181 = vmatpush1.bf16.msra.mxu0 %v145
    %182 = vmatprep.subr.bf16.mxu0 0
    %183 = vmatpush1.bf16.msra.mxu0 %v146
    %184 = vmatprep.subr.bf16.mxu0 0
    %185 = vmatpush1.bf16.msra.mxu0 %v147
    %186 = vmatprep.subr.bf16.mxu0 0
    %187 = vmatpush1.bf16.msra.mxu0 %v148
    %188 = vmatprep.subr.bf16.mxu0 0
    %189 = vmatpush1.bf16.msra.mxu0 %v149
    %190 = vmatprep.subr.bf16.mxu0 0
    %191 = vmatpush1.bf16.msra.mxu0 %v150
    %192 = vmatprep.subr.bf16.mxu0 0
    %193 = vmatpush1.bf16.msra.mxu0 %v151
    %194 = vmatprep.subr.bf16.mxu0 0
    %195 = vmatpush1.bf16.msra.mxu0 %v152
    %196 = vmatprep.subr.bf16.mxu0 0
    %197 = vmatpush1.bf16.msra.mxu0 0
    %198 = vmatprep.subr.bf16.mxu0 0
    %199 = vmatpush1.bf16.msra.mxu0 0
    %200 = vmatprep.subr.bf16.mxu0 0
    %201 = vmatpush1.bf16.msra.mxu0 0
    %202 = vmatprep.subr.bf16.mxu0 0
    %203 = vmatpush1.bf16.msra.mxu0 0
    %204 = vmatprep.mubr.bf16.mxu0 %v167
    %205 = vmatmul.mubr.bf16.gmra.mrb[0].mxu0 %v87
    %v206 = vpop.f32.mrb[0].mxu0
    %v207 = vadd.f32 0.0, %v206
    %v208 = vpop.f32.mrb[0].mxu0
    %v209 = vpop.f32.mrb[0].mxu0
    %v210 = vadd.f32 0.0, %v209
    %v211 = vpop.f32.mrb[0].mxu0
    %212 = vmatprep.mubr.bf16.mxu0 %v170
    %213 = vmatmul.mubr.bf16.gmra.mrb[0].mxu0 %v89
    %v214 = vpop.f32.mrb[0].mxu0
    %v215 = vadd.f32 0.0, %v214
    %v216 = vpop.f32.mrb[0].mxu0
    %v217 = vpop.f32.mrb[0].mxu0
    %v218 = vadd.f32 0.0, %v217
    %v219 = vpop.f32.mrb[0].mxu0
    %220 = vdwg.mxu0
    %v221 = vadd.f32 %v207, %v210
    %v222 = vadd.f32 %v221, %v215
    %v223 = vadd.f32 %v222, %v218
    %v224 = vrot.slane %v223, 4
    %v225 = vadd.f32 %v223, %v224
    %v226 = vrot.slane %v225, 2
    %v227 = vadd.f32 %v225, %v226
    %v228 = vrot.slane %v227, 1
    %v229 = vadd.f32 %v227, %v228
    %v230 = vmul.f32 %v207, %v207
    %v231 = vmul.f32 %v210, %v210
    %v232 = vmul.f32 %v215, %v215
    %v233 = vmul.f32 %v218, %v218
    %v234 = vadd.f32 %v230, %v231
    %v235 = vadd.f32 %v234, %v232
    %v236 = vadd.f32 %v235, %v233
    %v237 = vrot.slane %v236, 4
    %v238 = vadd.f32 %v236, %v237
    %v239 = vrot.slane %v238, 2
    %v240 = vadd.f32 %v238, %v239
    %v241 = vrot.slane %v240, 1
    %v242 = vadd.f32 %v240, %v241
    %vm243 = vcmask 1040384
    %v244 = vsel %vm243, %v229, %v242
    %v245 = vld [vmem:[%s3] sm:$0xff]
    %246 = vmatprep.subr.mxu0 0.0
    %247 = vmatpush1.xpose.msra.mxu0 %v245
    %248 = vmatprep.subr.mxu0 0.0
    %249 = vmatpush1.xpose.msra.mxu0 0.0
    %250 = vmatprep.subr.mxu0 0.0
    %251 = vmatpush1.xpose.msra.mxu0 0.0
    %252 = vmatprep.subr.mxu0 0.0
    %253 = vmatpush1.xpose.msra.mxu0 0.0
    %254 = vmatprep.subr.mxu0 0.0
    %255 = vmatpush1.xpose.msra.mxu0 0.0
    %256 = vmatprep.subr.mxu0 0.0
    %257 = vmatpush1.xpose.msra.mxu0 0.0
    %258 = vmatprep.subr.mxu0 0.0
    %259 = vmatpush1.xpose.msra.mxu0 0.0
    %260 = vmatprep.subr.mxu0 0.0
    %261 = vmatpush1.xpose.msra.mxu0 0.0
    %262 = vmatprep.subr.mxu0 0.0
    %263 = vmatpush1.xpose.msra.mxu0 0.0
    %264 = vmatprep.subr.mxu0 0.0
    %265 = vmatpush1.xpose.msra.mxu0 0.0
    %266 = vmatprep.subr.mxu0 0.0
    %267 = vmatpush1.xpose.msra.mxu0 0.0
    %268 = vmatprep.subr.mxu0 0.0
    %269 = vmatpush1.xpose.msra.mxu0 0.0
    %270 = vmatprep.subr.mxu0 0.0
    %271 = vmatpush1.xpose.msra.mxu0 0.0
    %272 = vmatprep.subr.mxu0 0.0
    %273 = vmatpush1.xpose.msra.mxu0 0.0
    %274 = vmatprep.subr.mxu0 0.0
    %275 = vmatpush1.xpose.msra.mxu0 0.0
    %276 = vmatprep.subr.mxu0 0.0
    %277 = vmatpush1.xpose.msra.mxu0 0.0
    %278 = vmatprep.subr.mxu0 0.0
    %279 = vmatpush1.xpose.msra.mxu0 0.0
    %280 = vmatprep.subr.mxu0 0.0
    %281 = vmatpush1.xpose.msra.mxu0 0.0
    %282 = vmatprep.subr.mxu0 0.0
    %283 = vmatpush1.xpose.msra.mxu0 0.0
    %284 = vmatprep.subr.mxu0 0.0
    %285 = vmatpush1.xpose.msra.mxu0 0.0
    %286 = vmatprep.subr.mxu0 0.0
    %287 = vmatpush1.xpose.msra.mxu0 0.0
    %288 = vmatprep.subr.mxu0 0.0
    %289 = vmatpush1.xpose.msra.mxu0 0.0
    %290 = vmatprep.subr.mxu0 0.0
    %291 = vmatpush1.xpose.msra.mxu0 0.0
    %292 = vmatprep.subr.mxu0 0.0
    %293 = vmatpush1.xpose.msra.mxu0 0.0
    %294 = vmatprep.subr.mxu0 0.0
    %295 = vmatpush1.xpose.msra.mxu0 0.0
    %296 = vmatprep.subr.mxu0 0.0
    %297 = vmatpush1.xpose.msra.mxu0 0.0
    %298 = vmatprep.subr.mxu0 0.0
    %299 = vmatpush1.xpose.msra.mxu0 0.0
    %300 = vmatprep.subr.mxu0 0.0
    %301 = vmatpush1.xpose.msra.mxu0 0.0
    %302 = vmatprep.subr.mxu0 0.0
    %303 = vmatpush1.xpose.msra.mxu0 0.0
    %304 = vmatprep.subr.mxu0 0.0
    %305 = vmatpush1.xpose.msra.mxu0 0.0
    %306 = vmatprep.subr.mxu0 0.0
    %307 = vmatpush1.xpose.msra.mxu0 0.0
    %308 = vmatprep.subr.mxu0 0.0
    %309 = vmatpush1.xpose.msra.mxu0 0.0
    %310 = vmatprep.mubr.f32.mxu0 0.0
    %311 = vmatmul.mubr.f32.gmra.mrb[0].mxu0 %v244
    %v312 = vpop.f32.mrb[0].mxu0
    %v313 = vadd.f32 0.0, %v312
    %v314 = vpop.f32.mrb[0].mxu0
    %315 = vdwg.mxu0
    %v316 = vmul.f32 %v313, 0.001953125
    %v317 = vmul.f32 %v316, %v316
    %v319 = vrot.slane %v317, 7
    %v321 = vsub.f32 %v316, %v319
    %v322 = vmax.f32 %v321, 0.0
    %v323 = vld [vmem:[%s2] sm:$0x1]
    %v324 = vadd.f32 %v322, 1e-05
    %v325 = vrsqrt.pop %v324
    %v327 = vrot.slane %v325, 1
    %v329 = vmul.f32 %v323, %v327
    %v330 = vld [vmem:[%s2 + $0x1] sm:$0x1]
    %v331 = vmul.f32 %v316, %v329
    %v332 = vsub.f32 %v330, %v331
    %v334 = vrot.slane %v332, 7
    %v336 = vsel %vm243, %v329, %v334
    %vm337 = vcmask 64512
    %v339 = vsel %vm337, %v336, 0
    %341 = vmatprep.subr.mxu0 0.0
    %342 = vmatpush1.msra.mxu0 %v245
    %343 = vmatprep.subr.mxu0 0.0
    %344 = vmatpush1.msra.mxu0 0.0
    %345 = vmatprep.subr.mxu0 0.0
    %346 = vmatpush1.msra.mxu0 0.0
    %347 = vmatprep.subr.mxu0 0.0
    %348 = vmatpush1.msra.mxu0 0.0
    %349 = vmatprep.subr.mxu0 0.0
    %350 = vmatpush1.msra.mxu0 0.0
    %351 = vmatprep.subr.mxu0 0.0
    %352 = vmatpush1.msra.mxu0 0.0
    %353 = vmatprep.subr.mxu0 0.0
    %354 = vmatpush1.msra.mxu0 0.0
    %355 = vmatprep.subr.mxu0 0.0
    %356 = vmatpush1.msra.mxu0 0.0
    %357 = vmatprep.subr.mxu0 0.0
    %358 = vmatpush1.msra.mxu0 0.0
    %359 = vmatprep.subr.mxu0 0.0
    %360 = vmatpush1.msra.mxu0 0.0
    %361 = vmatprep.subr.mxu0 0.0
    %362 = vmatpush1.msra.mxu0 0.0
    %363 = vmatprep.subr.mxu0 0.0
    %364 = vmatpush1.msra.mxu0 0.0
    %365 = vmatprep.subr.mxu0 0.0
    %366 = vmatpush1.msra.mxu0 0.0
    %367 = vmatprep.subr.mxu0 0.0
    %368 = vmatpush1.msra.mxu0 0.0
    %369 = vmatprep.subr.mxu0 0.0
    %370 = vmatpush1.msra.mxu0 0.0
    %371 = vmatprep.subr.mxu0 0.0
    %372 = vmatpush1.msra.mxu0 0.0
    %373 = vmatprep.subr.mxu0 0.0
    %374 = vmatpush1.msra.mxu0 0.0
    %375 = vmatprep.subr.mxu0 0.0
    %376 = vmatpush1.msra.mxu0 0.0
    %377 = vmatprep.subr.mxu0 0.0
    %378 = vmatpush1.msra.mxu0 0.0
    %379 = vmatprep.subr.mxu0 0.0
    %380 = vmatpush1.msra.mxu0 0.0
    %381 = vmatprep.subr.mxu0 0.0
    %382 = vmatpush1.msra.mxu0 0.0
    %383 = vmatprep.subr.mxu0 0.0
    %384 = vmatpush1.msra.mxu0 0.0
    %385 = vmatprep.subr.mxu0 0.0
    %386 = vmatpush1.msra.mxu0 0.0
    %387 = vmatprep.subr.mxu0 0.0
    %388 = vmatpush1.msra.mxu0 0.0
    %389 = vmatprep.subr.mxu0 0.0
    %390 = vmatpush1.msra.mxu0 0.0
    %391 = vmatprep.subr.mxu0 0.0
    %392 = vmatpush1.msra.mxu0 0.0
    %393 = vmatprep.subr.mxu0 0.0
    %394 = vmatpush1.msra.mxu0 0.0
    %395 = vmatprep.subr.mxu0 0.0
    %396 = vmatpush1.msra.mxu0 0.0
    %397 = vmatprep.subr.mxu0 0.0
    %398 = vmatpush1.msra.mxu0 0.0
    %399 = vmatprep.subr.mxu0 0.0
    %400 = vmatpush1.msra.mxu0 0.0
    %401 = vmatprep.subr.mxu0 0.0
    %402 = vmatpush1.msra.mxu0 0.0
    %403 = vmatprep.subr.mxu0 0.0
    %404 = vmatpush1.msra.mxu0 0.0
    %405 = vmatprep.mubr.f32.mxu0 0.0
    %406 = vmatmul.mubr.f32.gmra.mrb[0].mxu0 %v339
    %v407 = vpop.f32.mrb[0].mxu0
    %v408 = vadd.f32 0.0, %v407
    %v409 = vpop.f32.mrb[0].mxu0
    %410 = vdwg.mxu0
    %v411 = vlaneseq
    %v412 = vshrl.u32 %v411, 7
    %v413 = vsub.s32 0, %v412
    %v414 = vrot.slane %v408, %v413
    %v415 = vmul.f32 %v207, %v414
    %v416 = vmul.f32 %v210, %v414
    %v417 = vmul.f32 %v215, %v414
    %v418 = vmul.f32 %v218, %v414
    %v419 = vlaneseq
    %v420 = vshrl.u32 %v419, 7
    %v421 = vsub.s32 1, %v420
    %v422 = vrot.slane %v408, %v421
    %v423 = vadd.f32 %v415, %v422
    %v424 = vadd.f32 %v416, %v422
    %v425 = vadd.f32 %v417, %v422
    %v426 = vadd.f32 %v418, %v422
    %vm427 = vcmp.ge.f32.partialorder %v423, 0.0
    %vm428 = vcmp.ge.f32.partialorder %v424, 0.0
    %vm429 = vcmp.ge.f32.partialorder %v425, 0.0
    %vm430 = vcmp.ge.f32.partialorder %v426, 0.0
    %v431 = vmul.f32 %v423, 0.01
    %v432 = vmul.f32 %v424, 0.01
    %v433 = vmul.f32 %v425, 0.01
    %v434 = vmul.f32 %v426, 0.01
    %v435 = vsel %vm427, %v423, %v431
    %v436 = vsel %vm428, %v424, %v432
    %v437 = vsel %vm429, %v425, %v433
    %v438 = vsel %vm430, %v426, %v434
    %439 = vst [vmem:[#allocation7] sm:$0xff] %v435
    %440 = vst [vmem:[#allocation7 + $0x8] sm:$0xff] %v436
    %441 = vst [vmem:[#allocation7 + $0x10] sm:$0xff] %v437
    %442 = vst [vmem:[#allocation7 + $0x18] sm:$0xff] %v438
    // Predicated region
    $region26: #{tpu_custom_call.1} parent=1 // pred_check
      _
    $region27: #{tpu_custom_call.1} parent=1 // pred_check_branch
      %444 = sbr.rel (0) target = $region29
    $region28: #{tpu_custom_call.1} parent=1 // pred_region
      %s446 = ssub.s32 512, 512
      %447 = vsyncadd [#allocation4], %s446
      %s448 = sshll.u32 [#allocation7], 4
      %s449 = int_to_ptr.vmem [resolvable:$true] %s448
      %454 = dma.vmem_to_hbm [thread:$0]  %s449, 512, %s4, [#allocation4], 128, 128, 8
    $region29: #{tpu_custom_call.1} parent=1 // pred_fallthru
      _
    // Predicated region
    $region30: #{tpu_custom_call.1} parent=1 // pred_check
      _
    $region31: #{tpu_custom_call.1} parent=1 // pred_check_branch
      %456 = sbr.rel (0) target = $region33
    $region32: #{tpu_custom_call.1} parent=1 // pred_region
      %457 = dma.done [#allocation4], 512
    $region33: #{tpu_custom_call.1} parent=1 // pred_fallthru
      _
    %458 = vsyncpa [#allocation3], 1
    %459 = vsyncpa [#allocation6], 1
    %460 = vsyncpa [#allocation4], 1

</llo_original>
